<compile_context>
chip_gen: v7x
topology: tpu7x:2x2x1
jax: 0.10.0
libtpu: 0.0.40
codegen_flags: <defaults>
</compile_context>

<pallas_src>
import functools

import numpy as np
import jax
import jax.numpy as jnp
from jax.experimental import pallas as pl
from jax.experimental.pallas import tpu as pltpu


# --------------------------------------------------------------------------- #
# Kernels
# --------------------------------------------------------------------------- #
def _conv_gemm_kernel(p_ref, w_ref, b_ref, o_ref):
    """num_k == 1: out[oc, m] = W[oc, :] @ patches_T[:, m] + bias[oc] (f32)."""
    acc = jnp.dot(w_ref[...], p_ref[0], preferred_element_type=jnp.float32)
    o_ref[0] = (acc + b_ref[...]).astype(o_ref.dtype)


def _conv_gemm_kernel_acc(p_ref, w_ref, b_ref, o_ref, acc_ref):
    """num_k > 1: K-reduction on the last ('arbitrary') grid axis, f32 acc."""
    k = pl.program_id(2)

    @pl.when(k == 0)
    def _init():
        acc_ref[...] = jnp.zeros_like(acc_ref)

    acc_ref[...] += jnp.dot(w_ref[...], p_ref[0],
                            preferred_element_type=jnp.float32)

    @pl.when(k == pl.num_programs(2) - 1)
    def _finalize():
        o_ref[0] = (acc_ref[...] + b_ref[...]).astype(o_ref.dtype)


# --------------------------------------------------------------------------- #
# Helpers
# --------------------------------------------------------------------------- #
def _cdiv(a, b):
    return -(-a // b)


def _round_up(x, m):
    return _cdiv(x, m) * m


def _pair(v):
    return (v, v) if isinstance(v, int) else tuple(v)


def _choose_tile_m(msp_lanes, batch, max_tile_m=1024):
    """Per-batch spatial (lane) tile. msp_lanes = OH*OW rounded up to 128."""
    tile = min(msp_lanes, max_tile_m)
    num = _cdiv(msp_lanes, tile)
    # v7x has 2 TensorCores and (batch, m) are the parallel grid axes: when
    # there is enough spatial work, keep the total number of parallel blocks
    # even so neither core idles or gets a 2:1 share.
    if (batch * num) % 2 == 1 and msp_lanes >= 256:
        for cand in range(num + 1, 2 * num + 2):
            t = _round_up(_cdiv(msp_lanes, cand), 128)
            if (batch * _cdiv(msp_lanes, t)) % 2 == 0:
                return t
    return tile


def _im2col_batched(x_nchw, kh, kw, stride, pad, k_pad, msp_total, dtype):
    """Patches [B, K_pad, Msp_total]; K ordered (kh, kw, c), Msp = OH*OW.

    Built as one slice/stack/reshape/cast/pad chain so that, under jit, XLA
    emits a single fused materialization of the padded low-precision array
    (no separate ones-row concat / pad / astype passes over [K, M]).
    """
    B, C, H, W = x_nchw.shape
    sh, sw = stride
    ph, pw = pad
    OH = (H + 2 * ph - kh) // sh + 1
    OW = (W + 2 * pw - kw) // sw + 1
    xp = jnp.pad(x_nchw, ((0, 0), (0, 0), (ph, ph), (pw, pw)))
    taps = []
    for i in range(kh):
        for j in range(kw):
            taps.append(xp[:, :, i:i + OH * sh:sh, j:j + OW * sw:sw])  # [B,C,OH,OW]
    p = jnp.stack(taps, axis=1)                          # [B, KH*KW, C, OH, OW]
    p = p.reshape(B, kh * kw * C, OH * OW).astype(dtype)
    p = jnp.pad(p, ((0, 0), (0, k_pad - kh * kw * C), (0, msp_total - OH * OW)))
    return p


# --------------------------------------------------------------------------- #
# Wrapper: weight_norm + conv forward
# --------------------------------------------------------------------------- #
def conv2d_weightnorm(x_nchw, v, g, bias, *, stride=2, padding=1,
                      tile_m=None, tile_k=2048,
                      compute_dtype=jnp.bfloat16, eps=1e-12):
    """
    x_nchw: [B, C, H, W] float32
    v:      [OC, C, KH, KW]  weight_norm direction (weight_v)
    g:      [OC]             weight_norm magnitude (weight_g)
    bias:   [OC]
    Returns [B, OC, OH, OW], matching torch.nn.Conv2d(..., stride, padding)
    wrapped in nn.utils.weight_norm.  Intended to run under jax.jit so the
    im2col producer fuses into a single HBM materialization.
    """
    OC, C, KH, KW = v.shape
    B, _, H, W = x_nchw.shape
    stride = _pair(stride)
    padding = _pair(padding)
    sh, sw = stride
    ph, pw = padding
    OH = (H + 2 * ph - KH) // sh + 1
    OW = (W + 2 * pw - KW) // sw + 1

    # ---- weight_norm glue (f32): W = g * v / ||v||_2 per output channel (dim=0).
    v32 = v.astype(jnp.float32)
    v_norm = jnp.sqrt(jnp.sum(v32 * v32, axis=(1, 2, 3), keepdims=True))
    w = g.reshape(OC, 1, 1, 1).astype(jnp.float32) * v32 / jnp.maximum(v_norm, eps)
    # [OC, K] with K ordered (kh, kw, c) to match the patches layout.
    w_mat = jnp.transpose(w, (0, 2, 3, 1)).reshape(OC, KH * KW * C)

    K = KH * KW * C
    OC_pad = _round_up(OC, 8)                 # sublane-aligned output channels

    # ---- K tiling: keep num_k == 1 whenever K fits (no accumulator passes).
    if K <= tile_k:
        K_pad = _round_up(K, 8)               # sublane-aligned contraction extent
        tile_k_eff, num_k = K_pad, 1
    else:
        tile_k_eff = _round_up(min(tile_k, K), 128)   # lane dim of weight block
        K_pad = _round_up(K, tile_k_eff)
        num_k = K_pad // tile_k_eff

    w_pad = jnp.pad(w_mat, ((0, OC_pad - OC), (0, K_pad - K))).astype(compute_dtype)
    # Bias stays f32 and is added at finalize inside the kernel (free VPU work).
    bias_col = jnp.pad(bias.astype(jnp.float32).reshape(OC, 1),
                       ((0, OC_pad - OC), (0, 0)))

    # ---- spatial (lane) tiling per batch element; batch is its own parallel axis.
    Msp = OH * OW
    msp_lanes = _round_up(Msp, 128)
    if tile_m is None:
        tile_m = _choose_tile_m(msp_lanes, B)
    num_m = _cdiv(msp_lanes, tile_m)
    Msp_total = num_m * tile_m

    patches = _im2col_batched(x_nchw.astype(jnp.float32), KH, KW, stride, padding,
                              K_pad, Msp_total, compute_dtype)

    # ---- VMEM budget (double-buffered operands + f32 output / accumulator).
    itm = jnp.dtype(compute_dtype).itemsize
    per_step = (2 * tile_k_eff * tile_m * itm            # patches (double-buffered)
                + 2 * OC_pad * tile_k_eff * itm          # weight
                + OC_pad * 4                             # bias
                + 2 * OC_pad * tile_m * 4                # output (double-buffered)
                + (OC_pad * tile_m * 4 if num_k > 1 else 0))
    vmem_limit = int(min(max(4 * per_step, 32 * 1024 * 1024), 48 * 1024 * 1024))

    out_shape = jax.ShapeDtypeStruct((B, OC_pad, Msp_total), jnp.float32)

    if num_k == 1:
        grid = (B, num_m)
        in_specs = [
            pl.BlockSpec((1, K_pad, tile_m), lambda b, m: (b, 0, m)),
            # Weight / bias index maps are constant -> DMA'd exactly once.
            pl.BlockSpec((OC_pad, K_pad), lambda b, m: (0, 0)),
            pl.BlockSpec((OC_pad, 1), lambda b, m: (0, 0)),
        ]
        out_spec = pl.BlockSpec((1, OC_pad, tile_m), lambda b, m: (b, 0, m))
        scratch = ()
        kernel = _conv_gemm_kernel
        semantics = ("parallel", "parallel")
    else:
        grid = (B, num_m, num_k)                          # reduction axis last
        in_specs = [
            pl.BlockSpec((1, tile_k_eff, tile_m), lambda b, m, k: (b, k, m)),
            pl.BlockSpec((OC_pad, tile_k_eff), lambda b, m, k: (0, k)),
            pl.BlockSpec((OC_pad, 1), lambda b, m, k: (0, 0)),
        ]
        out_spec = pl.BlockSpec((1, OC_pad, tile_m), lambda b, m, k: (b, 0, m))
        scratch = (pltpu.VMEM((OC_pad, tile_m), jnp.float32),)
        kernel = _conv_gemm_kernel_acc
        semantics = ("parallel", "parallel", "arbitrary")

    out = pl.pallas_call(
        kernel,
        out_shape=out_shape,
        grid_spec=pltpu.PrefetchScalarGridSpec(
            num_scalar_prefetch=0,
            grid=grid,
            in_specs=in_specs,
            out_specs=out_spec,
            scratch_shapes=scratch,
        ),
        compiler_params=pltpu.CompilerParams(
            dimension_semantics=semantics,
            vmem_limit_bytes=vmem_limit,
        ),
    )(patches, w_pad, bias_col)

    # Drop channel / lane padding; layout is already (B, OC, spatial) so the
    # final result needs only a reshape (no HBM transpose pass).
    out = out[:, :OC, :Msp]
    return out.reshape(B, OC, OH, OW)


# --------------------------------------------------------------------------- #
# Self-test
# --------------------------------------------------------------------------- #
if __name__ == "__main__":
    # Module config: Conv2D(in_channels=4, out_channels=8) -> k=3, stride=2, pad=1
    B, C, H, W = 2, 4, 16, 16
    OC, KH, KW = 8, 3, 3
    stride, pad = 2, 1

    key = jax.random.PRNGKey(0)
    kx, kv, kb = jax.random.split(key, 3)

    x = jax.random.normal(kx, (B, C, H, W), dtype=jnp.float32)

    # Deterministic parameter init mirroring the module's __init__:
    #  - v (weight_v): Kaiming-normal, std = sqrt(2 / fan_in), fan_in = C*KH*KW
    #  - g (weight_g): ||v|| per output channel (weight_norm's init)
    #  - bias: uniform(-1/sqrt(fan_in), 1/sqrt(fan_in)) like nn.Conv2d default
    fan_in = C * KH * KW
    v = jax.random.normal(kv, (OC, C, KH, KW), dtype=jnp.float32) * np.sqrt(2.0 / fan_in)
    g = jnp.sqrt(jnp.sum(v ** 2, axis=(1, 2, 3)))
    bias_bound = 1.0 / np.sqrt(fan_in)
    bias = jax.random.uniform(kb, (OC,), dtype=jnp.float32,
                              minval=-bias_bound, maxval=bias_bound)

    conv_fn = jax.jit(functools.partial(conv2d_weightnorm, stride=stride, padding=pad))
    out = conv_fn(x, v, g, bias)
    out = jax.block_until_ready(out)

    OH = (H + 2 * pad - KH) // stride + 1
    OW = (W + 2 * pad - KW) // stride + 1
    assert out.shape == (B, OC, OH, OW)

    # Sanity-check against XLA's conv with the same weight-normalized filter.
    w_eff = g.reshape(OC, 1, 1, 1) * v / jnp.sqrt(
        jnp.sum(v ** 2, axis=(1, 2, 3), keepdims=True))
    ref = jax.lax.conv_general_dilated(
        x, w_eff, window_strides=(stride, stride),
        padding=((pad, pad), (pad, pad)),
        dimension_numbers=("NCHW", "OIHW", "NCHW"),
    ) + bias.reshape(1, OC, 1, 1)
    # bf16 operands with f32 accumulation; tolerance sized accordingly.
    np.testing.assert_allclose(np.asarray(out), np.asarray(ref), rtol=2e-2, atol=3e-2)

    print("KERNEL_OK")
</pallas_src>

<mosaic_0001>
module attributes {stable_mosaic.version = 11 : i64} {
  func.func @_conv_gemm_kernel(%arg0: i32, %arg1: i32, %arg2: memref<1x40x128xbf16, #tpu.memory_space<vmem>>, %arg3: memref<8x40xbf16, #tpu.memory_space<vmem>>, %arg4: memref<8x1xf32, #tpu.memory_space<vmem>>, %arg5: memref<1x8x128xf32, #tpu.memory_space<vmem>>) attributes {dimension_semantics = [#tpu.dimension_semantics<parallel>, #tpu.dimension_semantics<parallel>], iteration_bounds = array<i64: 2, 1>, scalar_prefetch = 0 : i64, scratch_operands = 0 : i64, tpu.core_type = #tpu.core_type<tc>, window_params = [{transform_indices = @transform_0, window_bounds = array<i64: 1, 40, 128>}, {pipeline_mode = #tpu.pipeline_mode<synchronous>, transform_indices = @transform_1, window_bounds = array<i64: 8, 40>}, {pipeline_mode = #tpu.pipeline_mode<synchronous>, transform_indices = @transform_2, window_bounds = array<i64: 8, 1>}, {transform_indices = @transform_3, window_bounds = array<i64: 1, 8, 128>}]} {
    %c0 = arith.constant 0 : index
    %c0_0 = arith.constant 0 : index
    %0 = vector.load %arg3[%c0, %c0_0] : memref<8x40xbf16, #tpu.memory_space<vmem>>, vector<8x40xbf16>
    %c0_1 = arith.constant 0 : index
    %c0_2 = arith.constant 0 : index
    %c0_3 = arith.constant 0 : index
    %1 = vector.load %arg2[%c0_1, %c0_2, %c0_3] : memref<1x40x128xbf16, #tpu.memory_space<vmem>>, vector<1x40x128xbf16>
    %2 = vector.shape_cast %1 : vector<1x40x128xbf16> to vector<40x128xbf16>
    %cst = arith.constant dense<0.000000e+00> : vector<8x128xf32>
    %3 = tpu.matmul %0, %2, %cst {dimension_numbers = #tpu.dot_dimension_numbers<[1], [0], [0], [1], [0, 0, 1, 1], [], []>} : vector<8x40xbf16>, vector<40x128xbf16>, vector<8x128xf32> -> vector<8x128xf32>
    %c0_4 = arith.constant 0 : index
    %c0_5 = arith.constant 0 : index
    %4 = vector.load %arg4[%c0_4, %c0_5] : memref<8x1xf32, #tpu.memory_space<vmem>>, vector<8x1xf32>
    %5 = vector.broadcast %4 : vector<8x1xf32> to vector<8x128xf32>
    %6 = arith.addf %3, %5 : vector<8x128xf32>
    %c0_6 = arith.constant 0 : index
    %c0_7 = arith.constant 0 : index
    %c0_8 = arith.constant 0 : index
    %7 = vector.load %arg5[%c0_6, %c0_7, %c0_8] : memref<1x8x128xf32, #tpu.memory_space<vmem>>, vector<1x8x128xf32>
    %8 = vector.shape_cast %7 : vector<1x8x128xf32> to vector<8x128xf32>
    %9 = vector.shape_cast %6 : vector<8x128xf32> to vector<1x8x128xf32>
    tpu.vector_store %arg5[%c0_6, %c0_7, %c0_8], %9 {strides = array<i32>} : memref<1x8x128xf32, #tpu.memory_space<vmem>>, vector<1x8x128xf32>,
    return
  }
  func.func @transform_0(%arg0: i32, %arg1: i32) -> (i32, i32, i32) {
    %c0_i32 = arith.constant 0 : i32
    %c0_i32_0 = arith.constant 0 : i32
    return %arg0, %c0_i32, %arg1 : i32, i32, i32
  }
  func.func @transform_1(%arg0: i32, %arg1: i32) -> (i32, i32) {
    %c0_i32 = arith.constant 0 : i32
    %c0_i32_0 = arith.constant 0 : i32
    %c0_i32_1 = arith.constant 0 : i32
    return %c0_i32, %c0_i32_0 : i32, i32
  }
  func.func @transform_2(%arg0: i32, %arg1: i32) -> (i32, i32) {
    %c0_i32 = arith.constant 0 : i32
    %c0_i32_0 = arith.constant 0 : i32
    %c0_i32_1 = arith.constant 0 : i32
    return %c0_i32, %c0_i32_0 : i32, i32
  }
  func.func @transform_3(%arg0: i32, %arg1: i32) -> (i32, i32, i32) {
    %c0_i32 = arith.constant 0 : i32
    %c0_i32_0 = arith.constant 0 : i32
    return %arg0, %c0_i32, %arg1 : i32, i32, i32
  }
}

</mosaic_0001>

<llo_original>
// kernel: conv2d_weightnorm.1
$region0: #{conv2d_weightnorm.1}
  #allocation0 [shape = 'u32[]', space=smem, size = 0x4, offset = 0x4, fixed_abs, tag = 'smem constant byte address 0x4 - core index']
  #allocation1 [shape = 'u32[144,128]{1,0:T(1,128)}', space=vmem, size = 0x12000, scoped, tag = 'internal scratch']
  %s0 = inlined_call_operand.vmem [shape: bf16[2,40,128], index: 0, kind: input, shape index: {}]
  %s1 = inlined_call_operand.vmem [shape: bf16[8,40], index: 1, kind: input, shape index: {}]
  %s2 = inlined_call_operand.vmem [shape: f32[8,1], index: 2, kind: input, shape index: {}]
  %s3 = inlined_call_operand.vmem [shape: f32[2,8,128], index: 3, kind: output, shape index: {}]
  %s4 = sld [smem:[#allocation0]]
  $region45: #{conv2d_weightnorm.1} parent=0
    _
  %s6 = ssub.s32 1, %s4
  %s7 = scalar_select 0, %s6, %s4
  loop: start=0, step=1, limit=4
  $region2: #{conv2d_weightnorm.1} parent=0 // loop_pre_header
    _
  $region3: #{conv2d_weightnorm.1} parent=0 // loop_header
    %s9 = sphi 0, %s13
    %p10 = scmp.ge.s32.totalorder %s9, 4
    %s16 = sphi 0, %s28
    %s17 = sphi 0, %s24
    %s18 = sphi 0, %s16
    %s19 = sphi 0, %s17
    %s20 = sphi 0, %s18
    %s21 = sphi 0, %s19
    %s33 = sphi 0, %s35
    %s36 = sphi 0, %s33
    %s37 = sphi 0, %s36
    %s53 = sphi 0, %s37
    %s57 = sphi 0, %s57
    %s59 = sphi 0, %s57
    %s60 = sphi 0, %s59
    %s74 = sphi 0, %s60
    %s78 = sphi 0, %s78
    %s80 = sphi 0, %s78
    %s81 = sphi 0, %s80
    %s95 = sphi 0, %s81
    %s103 = sphi 0, %s105
    %s106 = sphi 0, %s103
    %s107 = sphi 0, %s106
    %s123 = sphi 0, %s107
  $region4: #{conv2d_weightnorm.1} parent=0 // loop_header_branch
    %12 = sbr.rel (%p10) target = $region8
  $region5: #{conv2d_weightnorm.1} parent=0 // loop_body
    %s14 = ssub.s32 %s9, 1
    %s15 = ssub.s32 %s9, 2
    %s22 = sadd.s32 1, %s17
    %p23 = scmp.ge.s32.totalorder %s22, 1
    %s24 = scalar_select %p23, 0, %s22
    %s25 = sadd.s32 1, %s16
    %s26 = scalar_select %p23, %s25, %s16
    %p27 = scmp.ge.s32.totalorder %s26, 2
    %s28 = scalar_select %p27, 0, %s26
    %s29 = ssub.s32 %s16, %s28
    %s30 = ssub.s32 %s17, %s24
    %s31 = sor.u32 %s29, %s30
    %p32 = scmp.eq.s32.totalorder %s31, 0
    %s34 = sadd.s32 %s33, 1
    %s35 = scalar_select %p32, %s33, %s34
    %p38 = pneg %p32
    %p39 = scmp.eq.s32.totalorder %s9, 1
    %p40 = por %p38, %p39
    %p41 = scmp.ne.s32.totalorder %s33, %s36
    %p42 = scmp.eq.s32.totalorder %s9, 0
    %p43 = por %p41, %p42
    %p44 = scmp.ne.s32.totalorder %s33, %s36
    %p45 = scmp.eq.s32.totalorder %s14, 1
    %p46 = por %p44, %p45
    %p47 = scmp.ne.s32.totalorder %s36, %s37
    %p48 = scmp.eq.s32.totalorder %s14, 0
    %p49 = por %p47, %p48
    %p50 = scmp.ne.s32.totalorder %s36, %s37
    %p51 = scmp.eq.s32.totalorder %s15, 1
    %p52 = por %p50, %p51
    %p54 = scmp.ne.s32.totalorder %s37, %s53
    %p55 = scmp.eq.s32.totalorder %s15, 0
    %p56 = por %p54, %p55
    %s58 = sadd.s32 %s57, 1
    %p61 = scmp.eq.s32.totalorder %s9, 1
    %p62 = scmp.ne.s32.totalorder %s57, %s59
    %p63 = scmp.eq.s32.totalorder %s9, 0
    %p64 = por %p62, %p63
    %p65 = scmp.ne.s32.totalorder %s57, %s59
    %p66 = scmp.eq.s32.totalorder %s14, 1
    %p67 = por %p65, %p66
    %p68 = scmp.ne.s32.totalorder %s59, %s60
    %p69 = scmp.eq.s32.totalorder %s14, 0
    %p70 = por %p68, %p69
    %p71 = scmp.ne.s32.totalorder %s59, %s60
    %p72 = scmp.eq.s32.totalorder %s15, 1
    %p73 = por %p71, %p72
    %p75 = scmp.ne.s32.totalorder %s60, %s74
    %p76 = scmp.eq.s32.totalorder %s15, 0
    %p77 = por %p75, %p76
    %s79 = sadd.s32 %s78, 1
    %p82 = scmp.eq.s32.totalorder %s9, 1
    %p83 = scmp.ne.s32.totalorder %s78, %s80
    %p84 = scmp.eq.s32.totalorder %s9, 0
    %p85 = por %p83, %p84
    %p86 = scmp.ne.s32.totalorder %s78, %s80
    %p87 = scmp.eq.s32.totalorder %s14, 1
    %p88 = por %p86, %p87
    %p89 = scmp.ne.s32.totalorder %s80, %s81
    %p90 = scmp.eq.s32.totalorder %s14, 0
    %p91 = por %p89, %p90
    %p92 = scmp.ne.s32.totalorder %s80, %s81
    %p93 = scmp.eq.s32.totalorder %s15, 1
    %p94 = por %p92, %p93
    %p96 = scmp.ne.s32.totalorder %s81, %s95
    %p97 = scmp.eq.s32.totalorder %s15, 0
    %p98 = por %p96, %p97
    %s99 = ssub.s32 %s16, %s28
    %s100 = ssub.s32 %s17, %s24
    %s101 = sor.u32 %s99, %s100
    %p102 = scmp.eq.s32.totalorder %s101, 0
    %s104 = sadd.s32 %s103, 1
    %s105 = scalar_select %p102, %s103, %s104
    %p108 = pneg %p102
    %p109 = scmp.eq.s32.totalorder %s9, 1
    %p110 = por %p108, %p109
    %p111 = scmp.ne.s32.totalorder %s103, %s106
    %p112 = scmp.eq.s32.totalorder %s9, 0
    %p113 = por %p111, %p112
    %p114 = scmp.ne.s32.totalorder %s103, %s106
    %p115 = scmp.eq.s32.totalorder %s14, 1
    %p116 = por %p114, %p115
    %p117 = scmp.ne.s32.totalorder %s106, %s107
    %p118 = scmp.eq.s32.totalorder %s14, 0
    %p119 = por %p117, %p118
    %p120 = scmp.ne.s32.totalorder %s106, %s107
    %p121 = scmp.eq.s32.totalorder %s15, 1
    %p122 = por %p120, %p121
    %p124 = scmp.ne.s32.totalorder %s107, %s123
    %p125 = scmp.eq.s32.totalorder %s15, 0
    %p126 = por %p124, %p125
    %p127 = scmp.le.s32.totalorder 1, %s9
    %p128 = scmp.lt.s32.totalorder %s9, 3
    %p129 = pnand %p127, %p128
    %p130 = pneg %p129
    // Predicated region
    $region9: #{conv2d_weightnorm.1} parent=5 // pred_check
      _
    $region10: #{conv2d_weightnorm.1} parent=5 // pred_check_branch
      %132 = sbr.rel (%p129) target = $region12
    $region11: #{conv2d_weightnorm.1} parent=5 // pred_region
      %s133 = ssub.s32 %s9, 1
      // Predicated region
      $region13: #{conv2d_weightnorm.1} parent=11 // pred_check
        %p134 = pneg %p70
      $region14: #{conv2d_weightnorm.1} parent=11 // pred_check_branch
        %136 = sbr.rel (%p134) target = $region16
      $region15: #{conv2d_weightnorm.1} parent=11 // pred_region
        _
      $region16: #{conv2d_weightnorm.1} parent=11 // pred_fallthru
        _
      // Predicated region
      $region17: #{conv2d_weightnorm.1} parent=11 // pred_check
        %p137 = pneg %p91
      $region18: #{conv2d_weightnorm.1} parent=11 // pred_check_branch
        %139 = sbr.rel (%p137) target = $region20
      $region19: #{conv2d_weightnorm.1} parent=11 // pred_region
        _
      $region20: #{conv2d_weightnorm.1} parent=11 // pred_fallthru
        _
    $region12: #{conv2d_weightnorm.1} parent=5 // pred_fallthru
      _
    %p140 = scmp.lt.s32.totalorder %s9, 2
    // Predicated region
    $region21: #{conv2d_weightnorm.1} parent=5 // pred_check
      %p141 = pneg %p140
    $region22: #{conv2d_weightnorm.1} parent=5 // pred_check_branch
      %143 = sbr.rel (%p141) target = $region24
    $region23: #{conv2d_weightnorm.1} parent=5 // pred_region
      // Predicated region
      $region25: #{conv2d_weightnorm.1} parent=23 // pred_check
        %p144 = pneg %p43
      $region26: #{conv2d_weightnorm.1} parent=23 // pred_check_branch
        %146 = sbr.rel (%p144) target = $region28
      $region27: #{conv2d_weightnorm.1} parent=23 // pred_region
        %p147 = scmp.lt.s32.totalorder %s16, 1
        %s148 = scalar_select %p147, %s16, 1
        %p149 = scmp.lt.s32.totalorder %s17, 0
        %s150 = scalar_select %p149, %s17, 0
        %s151 = smul.addr %s148, 5
        %s152 = sadd.s32 %s150, %s151
        %s153 = smul.addr %s152, 4
        %s154 = scalar_lea.vmem %s0, %s153
      $region28: #{conv2d_weightnorm.1} parent=23 // pred_fallthru
        _
    $region24: #{conv2d_weightnorm.1} parent=5 // pred_fallthru
      _
    %p155 = scmp.le.s32.totalorder 1, %s9
    %p156 = scmp.lt.s32.totalorder %s9, 3
    %p157 = pnand %p155, %p156
    %p158 = pneg %p157
    // Predicated region
    $region29: #{conv2d_weightnorm.1} parent=5 // pred_check
      _
    $region30: #{conv2d_weightnorm.1} parent=5 // pred_check_branch
      %160 = sbr.rel (%p157) target = $region32
    $region31: #{conv2d_weightnorm.1} parent=5 // pred_region
      %s161 = ssub.s32 %s9, 1
      %p162 = scmp.lt.s32.totalorder %s18, 1
      %s163 = scalar_select %p162, %s18, 1
      %p164 = scmp.lt.s32.totalorder %s19, 0
      %s165 = scalar_select %p164, %s19, 0
      %s166 = smul.addr %s163, 5
      %s167 = sadd.s32 %s165, %s166
      %s168 = smul.addr %s167, 4
      %s169 = scalar_lea.vmem %s0, %s168
      %p170 = pneg %p49
      %p171 = pneg %p46
      %p172 = pneg %p70
      %p173 = pneg %p67
      %p174 = pneg %p91
      %p175 = pneg %p88
      %p176 = pneg %p119
      %p177 = pneg %p116
      %p178 = scmp.lt.s32.totalorder %s18, 1
      %s179 = scalar_select %p178, %s18, 1
      %p180 = scmp.lt.s32.totalorder %s19, 0
      %s181 = scalar_select %p180, %s19, 0
      %s182 = sadd.s32 %s181, %s179
      %s183 = smul.addr %s182, 8
      %s184 = scalar_lea.vmem %s3, %s183
      %p185 = scmp.lt.s32.totalorder %s18, 1
      %s186 = scalar_select %p185, %s18, 1
      %p187 = scmp.lt.s32.totalorder %s19, 0
      %s188 = scalar_select %p187, %s19, 0
      %s189 = smul.addr %s186, 5
      %s190 = sadd.s32 %s188, %s189
      %s191 = smul.addr %s190, 4
      %s192 = scalar_lea.vmem %s0, %s191
      %p193 = scmp.lt.s32.totalorder %s18, 1
      %s194 = scalar_select %p193, %s18, 1
      %p195 = scmp.lt.s32.totalorder %s19, 0
      %s196 = scalar_select %p195, %s19, 0
      %s197 = sadd.s32 %s196, %s194
      %s198 = smul.addr %s197, 8
      %s199 = scalar_lea.vmem %s3, %s198
      %v201 = vld [vmem:[%s1] sm:$0xf]
      %v202 = vld [vmem:[%s192] sm:$0xf]
      %v203 = vld [vmem:[%s192 + $0x4] sm:$0xf]
      %v204 = vld [vmem:[%s192 + $0x8] sm:$0xf]
      %v205 = vld [vmem:[%s192 + $0xc] sm:$0xf]
      %v206 = vld [vmem:[%s192 + $0x10] sm:$0xf]
      %v207 = vld [vmem:[%s2] sm:$0xff]
      %209 = vset.pattern.permute.xlu0 0
      %210 = vperm.xlu0 %209, %v207
      %v211 = vpop.permute.xlu0 %210
      %v218 = vunpack.c.l.b16 %v202
      %v219 = vunpack.c.l.b16 %v203
      %v220 = vunpack.c.l.b16 %v204
      %v221 = vunpack.c.l.b16 %v205
      %v222 = vunpack.c.l.b16 %v206
      %v223 = vpack.c.b16 %v219, %v218
      %v224 = vpack.c.b16 %v221, %v220
      %v225 = vpack.c.b16 %v222, %v222
      %vm228 = vcmask 326656
      %v230 = vsel %vm228, %v201, 0
      %vm232 = vcmask 1043456
      %v234 = vsel %vm232, %v225, 0
      %236 = vmatprep.subr.bf16.mxu0 0
      %237 = vmatpush1.bf16.msra.mxu0 %v223
      %238 = vmatprep.subr.bf16.mxu0 0
      %239 = vmatpush1.bf16.msra.mxu0 %v224
      %240 = vmatprep.subr.bf16.mxu0 0
      %241 = vmatpush1.bf16.msra.mxu0 %v234
      %242 = vmatprep.subr.bf16.mxu0 0
      %243 = vmatpush1.bf16.msra.mxu0 0
      %244 = vmatprep.subr.bf16.mxu0 0
      %245 = vmatpush1.bf16.msra.mxu0 0
      %246 = vmatprep.subr.bf16.mxu0 0
      %247 = vmatpush1.bf16.msra.mxu0 0
      %248 = vmatprep.subr.bf16.mxu0 0
      %249 = vmatpush1.bf16.msra.mxu0 0
      %250 = vmatprep.subr.bf16.mxu0 0
      %251 = vmatpush1.bf16.msra.mxu0 0
      %252 = vmatprep.subr.bf16.mxu0 0
      %253 = vmatpush1.bf16.msra.mxu0 0
      %254 = vmatprep.subr.bf16.mxu0 0
      %255 = vmatpush1.bf16.msra.mxu0 0
      %256 = vmatprep.subr.bf16.mxu0 0
      %257 = vmatpush1.bf16.msra.mxu0 0
      %258 = vmatprep.subr.bf16.mxu0 0
      %259 = vmatpush1.bf16.msra.mxu0 0
      %260 = vmatprep.subr.bf16.mxu0 0
      %261 = vmatpush1.bf16.msra.mxu0 0
      %262 = vmatprep.subr.bf16.mxu0 0
      %263 = vmatpush1.bf16.msra.mxu0 0
      %264 = vmatprep.subr.bf16.mxu0 0
      %265 = vmatpush1.bf16.msra.mxu0 0
      %266 = vmatprep.subr.bf16.mxu0 0
      %267 = vmatpush1.bf16.msra.mxu0 0
      %268 = vmatprep.mubr.bf16.mxu0 0
      %269 = vmatmul.mubr.bf16.gmra.mrb[0].mxu0 %v230
      %v270 = vpop.f32.mrb[0].mxu0
      %v271 = vadd.f32 %v211, %v270
      %v272 = vpop.f32.mrb[0].mxu0
      %v273 = vpop.f32.mrb[0].mxu0
      %v274 = vpop.f32.mrb[0].mxu0
      %275 = vdwg.mxu0
      %276 = vst [vmem:[%s199] sm:$0xff] %v271
      %p277 = scmp.lt.s32.totalorder %s18, 1
      %s278 = scalar_select %p277, %s18, 1
      %p279 = scmp.lt.s32.totalorder %s19, 0
      %s280 = scalar_select %p279, %s19, 0
      %s281 = sadd.s32 %s280, %s278
      %s282 = smul.addr %s281, 8
      %s283 = scalar_lea.vmem %s3, %s282
      // Predicated region
      $region33: #{conv2d_weightnorm.1} parent=31 // pred_check
        %p284 = pneg %p116
      $region34: #{conv2d_weightnorm.1} parent=31 // pred_check_branch
        %286 = sbr.rel (%p284) target = $region36
      $region35: #{conv2d_weightnorm.1} parent=31 // pred_region
        _
      $region36: #{conv2d_weightnorm.1} parent=31 // pred_fallthru
        _
    $region32: #{conv2d_weightnorm.1} parent=5 // pred_fallthru
      _
    %p287 = scmp.le.s32.totalorder 2, %s9
    // Predicated region
    $region37: #{conv2d_weightnorm.1} parent=5 // pred_check
      %p288 = pneg %p287
    $region38: #{conv2d_weightnorm.1} parent=5 // pred_check_branch
      %290 = sbr.rel (%p288) target = $region40
    $region39: #{conv2d_weightnorm.1} parent=5 // pred_region
      %s291 = ssub.s32 %s9, 2
      // Predicated region
      $region41: #{conv2d_weightnorm.1} parent=39 // pred_check
        %p292 = pneg %p122
      $region42: #{conv2d_weightnorm.1} parent=39 // pred_check_branch
        %294 = sbr.rel (%p292) target = $region44
      $region43: #{conv2d_weightnorm.1} parent=39 // pred_region
        %p295 = scmp.lt.s32.totalorder %s20, 1
        %s296 = scalar_select %p295, %s20, 1
        %p297 = scmp.lt.s32.totalorder %s21, 0
        %s298 = scalar_select %p297, %s21, 0
        %s299 = sadd.s32 %s298, %s296
        %s300 = smul.addr %s299, 8
        %s301 = scalar_lea.vmem %s3, %s300
      $region44: #{conv2d_weightnorm.1} parent=39 // pred_fallthru
        _
    $region40: #{conv2d_weightnorm.1} parent=5 // pred_fallthru
      _
  $region6: #{conv2d_weightnorm.1} parent=0 // loop_footer
    %s13 = sadd.s32 1, %s9
  $region7: #{conv2d_weightnorm.1} parent=0 // loop_footer_branch
    %8 = sbr.rel target = $region3
  $region8: #{conv2d_weightnorm.1} parent=0 // loop_exit
    _

</llo_original>
